<compile_context>
chip_gen: v7x
topology: tpu7x:2x2x1
jax: 0.10.0
libtpu: 0.0.40
codegen_flags: <defaults>
</compile_context>

<pallas_src>
import jax
import jax.numpy as jnp
from jax.experimental import pallas as pl
from jax.experimental.pallas import tpu as pltpu


def _senet_kernel(x_ref, w1t_ref, w2t_ref, o_ref):
    # x_ref  : [TN, C]  activation tile (native dtype)
    # w1t_ref: [C,  H]  squeeze weight, pre-transposed (in, out)
    # w2t_ref: [H,  C]  excitation weight, pre-transposed (in, out)
    x = x_ref[...]

    # squeeze: x @ W1.T -> [TN, H], f32 accumulate, ReLU
    h = jnp.dot(x, w1t_ref[...], preferred_element_type=jnp.float32)
    h = jnp.maximum(h, 0.0)

    # excitation: h @ W2.T -> [TN, C], f32 accumulate, sigmoid
    g = jnp.dot(h.astype(w2t_ref.dtype), w2t_ref[...],
                preferred_element_type=jnp.float32)
    g = jax.nn.sigmoid(g)

    # gate the input (f32 elementwise, single cast to output dtype)
    o_ref[...] = (x.astype(jnp.float32) * g).astype(o_ref.dtype)


def _pick_row_tile(n, c, itemsize):
    """Row-tile TN: ~2 MiB per x block, multiple of 8 sublanes, capped at 4096."""
    target_bytes = 2 * 1024 * 1024
    tn = max(8, target_bytes // max(1, c * itemsize))
    tn = min(int(tn), 4096)
    tn = (tn // 8) * 8
    if n <= tn:
        # single block: just round n up to a sublane multiple
        return int(-(-n // 8) * 8)
    return tn


def senet_pallas(x, w1, w2):
    """x: (..., C), w1: (C//ratio, C), w2: (C, C//ratio) (nn.Linear layout)."""
    orig_shape = x.shape
    C = orig_shape[-1]
    H = w1.shape[0]

    x2d = x.reshape(-1, C)
    N = x2d.shape[0]

    # Pre-transpose weights once in XLA so the kernel feeds the MXU directly
    # (no per-grid-step in-kernel transpose).
    w1t = jnp.transpose(w1)  # (C, H)
    w2t = jnp.transpose(w2)  # (H, C)

    itemsize = jnp.dtype(x.dtype).itemsize
    TN = _pick_row_tile(N, C, itemsize)
    n_blocks = pl.cdiv(N, TN)
    N_pad = n_blocks * TN
    if N_pad != N:
        x2d = jnp.pad(x2d, ((0, N_pad - N), (0, 0)))

    cost = pl.CostEstimate(
        flops=int(2 * N * C * H * 2 + N * C),
        transcendentals=int(N * C),
        bytes_accessed=int(2 * N * C * itemsize
                           + 2 * C * H * jnp.dtype(w1.dtype).itemsize),
    )

    out = pl.pallas_call(
        _senet_kernel,
        out_shape=jax.ShapeDtypeStruct((N_pad, C), x.dtype),
        grid_spec=pltpu.PrefetchScalarGridSpec(
            num_scalar_prefetch=0,
            grid=(n_blocks,),
            in_specs=[
                pl.BlockSpec((TN, C), lambda i: (i, 0)),   # x tile, pipelined over rows
                pl.BlockSpec((C, H), lambda i: (0, 0)),    # tiny weights stay resident
                pl.BlockSpec((H, C), lambda i: (0, 0)),
            ],
            out_specs=pl.BlockSpec((TN, C), lambda i: (i, 0)),
        ),
        compiler_params=pltpu.CompilerParams(
            dimension_semantics=("parallel",)),
        cost_estimate=cost,
    )(x2d, w1t, w2t)

    if N_pad != N:
        out = out[:N]
    return out.reshape(orig_shape)


def senet_reference(x, w1, w2):
    h = jnp.maximum(jnp.einsum("...c,hc->...h", x, w1), 0.0)
    g = jax.nn.sigmoid(jnp.einsum("...h,ch->...c", h, w2))
    return x * g


if __name__ == "__main__":
    # SENet(channels=32, ratio=8): squeeze weight (4, 32), excitation weight (32, 4).
    channels = 32
    ratio = 8
    hidden = channels // ratio

    key = jax.random.PRNGKey(0)
    kx, k1, k2, kx2, kx3 = jax.random.split(key, 5)

    bound1 = 1.0 / (channels ** 0.5)
    bound2 = 1.0 / (hidden ** 0.5)
    w1 = jax.random.uniform(k1, (hidden, channels), jnp.float32, -bound1, bound1)
    w2 = jax.random.uniform(k2, (channels, hidden), jnp.float32, -bound2, bound2)

    # Feature axis last, matching nn.Linear.  Three cases exercise:
    #   (2, 8, 32)    -> single block, N already sublane-aligned
    #   (3, 5, 32)    -> single block with row padding (N=15 -> 16)
    #   (64, 128, 32) -> multi-block grid (N=8192 -> 2 blocks of 4096)
    test_inputs = [
        jax.random.normal(kx, (2, 8, channels), dtype=jnp.float32),
        jax.random.normal(kx2, (3, 5, channels), dtype=jnp.float32),
        jax.random.normal(kx3, (64, 128, channels), dtype=jnp.float32),
    ]

    for x in test_inputs:
        out = jax.block_until_ready(senet_pallas(x, w1, w2))
        ref = senet_reference(x, w1, w2)
        assert out.shape == x.shape and out.dtype == x.dtype
        assert jnp.allclose(out, ref, atol=1e-5, rtol=1e-5), \
            f"mismatch vs reference for shape {x.shape}"

    print("KERNEL_OK")
</pallas_src>

<mosaic_0001>
module attributes {stable_mosaic.version = 11 : i64} {
  func.func @_senet_kernel(%arg0: i32, %arg1: memref<16x32xf32, #tpu.memory_space<vmem>>, %arg2: memref<32x4xf32, #tpu.memory_space<vmem>>, %arg3: memref<4x32xf32, #tpu.memory_space<vmem>>, %arg4: memref<16x32xf32, #tpu.memory_space<vmem>>) attributes {dimension_semantics = [#tpu.dimension_semantics<parallel>], iteration_bounds = array<i64: 1>, scalar_prefetch = 0 : i64, scratch_operands = 0 : i64, tpu.core_type = #tpu.core_type<tc>, window_params = [{transform_indices = @transform_0, window_bounds = array<i64: 16, 32>}, {pipeline_mode = #tpu.pipeline_mode<synchronous>, transform_indices = @transform_1, window_bounds = array<i64: 32, 4>}, {pipeline_mode = #tpu.pipeline_mode<synchronous>, transform_indices = @transform_2, window_bounds = array<i64: 4, 32>}, {transform_indices = @transform_3, window_bounds = array<i64: 16, 32>}]} {
    %c0 = arith.constant 0 : index
    %c0_0 = arith.constant 0 : index
    %0 = vector.load %arg1[%c0, %c0_0] : memref<16x32xf32, #tpu.memory_space<vmem>>, vector<16x32xf32>
    %c0_1 = arith.constant 0 : index
    %c0_2 = arith.constant 0 : index
    %1 = vector.load %arg2[%c0_1, %c0_2] : memref<32x4xf32, #tpu.memory_space<vmem>>, vector<32x4xf32>
    %cst = arith.constant dense<0.000000e+00> : vector<16x4xf32>
    %2 = tpu.matmul %0, %1, %cst {dimension_numbers = #tpu.dot_dimension_numbers<[1], [0], [0], [1], [0, 0, 1, 1], [], []>} : vector<16x32xf32>, vector<32x4xf32>, vector<16x4xf32> -> vector<16x4xf32>
    %cst_3 = arith.constant 0.000000e+00 : f32
    %3 = vector.broadcast %cst_3 : f32 to vector<16x4xf32>
    %4 = arith.maximumf %2, %3 : vector<16x4xf32>
    %c0_4 = arith.constant 0 : index
    %c0_5 = arith.constant 0 : index
    %5 = vector.load %arg3[%c0_4, %c0_5] : memref<4x32xf32, #tpu.memory_space<vmem>>, vector<4x32xf32>
    %cst_6 = arith.constant dense<0.000000e+00> : vector<16x32xf32>
    %6 = tpu.matmul %4, %5, %cst_6 {dimension_numbers = #tpu.dot_dimension_numbers<[1], [0], [0], [1], [0, 0, 1, 1], [], []>} : vector<16x4xf32>, vector<4x32xf32>, vector<16x32xf32> -> vector<16x32xf32>
    %7 = arith.negf %6 : vector<16x32xf32>
    %8 = math.exp %7 : vector<16x32xf32>
    %cst_7 = arith.constant 1.000000e+00 : f32
    %9 = vector.broadcast %cst_7 : f32 to vector<16x32xf32>
    %10 = arith.addf %9, %8 : vector<16x32xf32>
    %11 = arith.divf %9, %10 : vector<16x32xf32>
    %12 = arith.mulf %0, %11 : vector<16x32xf32>
    %c0_8 = arith.constant 0 : index
    %c0_9 = arith.constant 0 : index
    %13 = vector.load %arg4[%c0_8, %c0_9] : memref<16x32xf32, #tpu.memory_space<vmem>>, vector<16x32xf32>
    tpu.vector_store %arg4[%c0_8, %c0_9], %12 {strides = array<i32>} : memref<16x32xf32, #tpu.memory_space<vmem>>, vector<16x32xf32>,
    return
  }
  func.func @transform_0(%arg0: i32) -> (i32, i32) {
    %c0_i32 = arith.constant 0 : i32
    %c0_i32_0 = arith.constant 0 : i32
    return %arg0, %c0_i32 : i32, i32
  }
  func.func @transform_1(%arg0: i32) -> (i32, i32) {
    %c0_i32 = arith.constant 0 : i32
    %c0_i32_0 = arith.constant 0 : i32
    %c0_i32_1 = arith.constant 0 : i32
    return %c0_i32, %c0_i32_0 : i32, i32
  }
  func.func @transform_2(%arg0: i32) -> (i32, i32) {
    %c0_i32 = arith.constant 0 : i32
    %c0_i32_0 = arith.constant 0 : i32
    %c0_i32_1 = arith.constant 0 : i32
    return %c0_i32, %c0_i32_0 : i32, i32
  }
  func.func @transform_3(%arg0: i32) -> (i32, i32) {
    %c0_i32 = arith.constant 0 : i32
    %c0_i32_0 = arith.constant 0 : i32
    return %arg0, %c0_i32 : i32, i32
  }
}

</mosaic_0001>

<llo_original>
// kernel: tpu_custom_call.1
$region0: #{tpu_custom_call.1}
  #allocation0 [shape = 'u32[]', space=smem, size = 0x4, offset = 0x4, fixed_abs, tag = 'smem constant byte address 0x4 - core index']
  #allocation1 [shape = 'u32[144,128]{1,0:T(1,128)}', space=vmem, size = 0x12000, scoped, tag = 'internal scratch']
  %s0 = inlined_call_operand.vmem [shape: f32[16,32], index: 0, kind: input, shape index: {}]
  %s1 = inlined_call_operand.vmem [shape: f32[32,4], index: 1, kind: input, shape index: {}]
  %s2 = inlined_call_operand.vmem [shape: f32[4,32], index: 2, kind: input, shape index: {}]
  %s3 = inlined_call_operand.hbm [shape: f32[16,32], index: 3, kind: output, shape index: {}]
  %s4 = sld [smem:[#allocation0]]
  $region22: #{tpu_custom_call.1} parent=0
    _
  %s6 = ssub.s32 1, %s4
  %s7 = scalar_select 0, %s6, %s4
  $region1: #{tpu_custom_call.1} parent=0
    #allocation2 [shape = 'u8[8192]{0}', space=vmem, size = 0x2000, scoped, tag = 'output window, operand 0, single buffered']
    #allocation3 [shape = 's32[1]{0}', space=sflag, size = 0x4, scoped, tag = 'scoped memory for tpu_custom_call.1']
    %8 = vsyncpa [#allocation3], 0
    // Predicated region
    $region2: #{tpu_custom_call.1} parent=1 // pred_check
      _
    $region3: #{tpu_custom_call.1} parent=1 // pred_check_branch
      %10 = sbr.rel (0) target = $region5
    $region4: #{tpu_custom_call.1} parent=1 // pred_region
      _
    $region5: #{tpu_custom_call.1} parent=1 // pred_fallthru
      _
    // Predicated region
    $region6: #{tpu_custom_call.1} parent=1 // pred_check
      _
    $region7: #{tpu_custom_call.1} parent=1 // pred_check_branch
      %12 = sbr.rel (0) target = $region9
    $region8: #{tpu_custom_call.1} parent=1 // pred_region
      _
    $region9: #{tpu_custom_call.1} parent=1 // pred_fallthru
      _
    // Predicated region
    $region10: #{tpu_custom_call.1} parent=1 // pred_check
      _
    $region11: #{tpu_custom_call.1} parent=1 // pred_check_branch
      %14 = sbr.rel (0) target = $region13
    $region12: #{tpu_custom_call.1} parent=1 // pred_region
      _
    $region13: #{tpu_custom_call.1} parent=1 // pred_fallthru
      _
    %v15 = vld [vmem:[%s0] sm:$0xff]
    %v16 = vld [vmem:[%s0 + $0x8] sm:$0xff]
    %v17 = vld [vmem:[%s1] sm:$0xff]
    %v18 = vld [vmem:[%s1 + $0x8] sm:$0xff]
    %v19 = vld [vmem:[%s1 + $0x10] sm:$0xff]
    %v20 = vld [vmem:[%s1 + $0x18] sm:$0xff]
    %vm21 = vcmask 261120
    %v23 = vsel %vm21, %v15, 0
    %v26 = vsel %vm21, %v16, 0
    %28 = vmatprep.subr.mxu0 0.0
    %29 = vmatpush1.msra.mxu0 %v17
    %30 = vmatprep.subr.mxu0 0.0
    %31 = vmatpush1.msra.mxu0 %v18
    %32 = vmatprep.subr.mxu0 0.0
    %33 = vmatpush1.msra.mxu0 %v19
    %34 = vmatprep.subr.mxu0 0.0
    %35 = vmatpush1.msra.mxu0 %v20
    %36 = vmatprep.subr.mxu0 0.0
    %37 = vmatpush1.msra.mxu0 0.0
    %38 = vmatprep.subr.mxu0 0.0
    %39 = vmatpush1.msra.mxu0 0.0
    %40 = vmatprep.subr.mxu0 0.0
    %41 = vmatpush1.msra.mxu0 0.0
    %42 = vmatprep.subr.mxu0 0.0
    %43 = vmatpush1.msra.mxu0 0.0
    %44 = vmatprep.subr.mxu0 0.0
    %45 = vmatpush1.msra.mxu0 0.0
    %46 = vmatprep.subr.mxu0 0.0
    %47 = vmatpush1.msra.mxu0 0.0
    %48 = vmatprep.subr.mxu0 0.0
    %49 = vmatpush1.msra.mxu0 0.0
    %50 = vmatprep.subr.mxu0 0.0
    %51 = vmatpush1.msra.mxu0 0.0
    %52 = vmatprep.subr.mxu0 0.0
    %53 = vmatpush1.msra.mxu0 0.0
    %54 = vmatprep.subr.mxu0 0.0
    %55 = vmatpush1.msra.mxu0 0.0
    %56 = vmatprep.subr.mxu0 0.0
    %57 = vmatpush1.msra.mxu0 0.0
    %58 = vmatprep.subr.mxu0 0.0
    %59 = vmatpush1.msra.mxu0 0.0
    %60 = vmatprep.subr.mxu0 0.0
    %61 = vmatpush1.msra.mxu0 0.0
    %62 = vmatprep.subr.mxu0 0.0
    %63 = vmatpush1.msra.mxu0 0.0
    %64 = vmatprep.subr.mxu0 0.0
    %65 = vmatpush1.msra.mxu0 0.0
    %66 = vmatprep.subr.mxu0 0.0
    %67 = vmatpush1.msra.mxu0 0.0
    %68 = vmatprep.subr.mxu0 0.0
    %69 = vmatpush1.msra.mxu0 0.0
    %70 = vmatprep.subr.mxu0 0.0
    %71 = vmatpush1.msra.mxu0 0.0
    %72 = vmatprep.subr.mxu0 0.0
    %73 = vmatpush1.msra.mxu0 0.0
    %74 = vmatprep.subr.mxu0 0.0
    %75 = vmatpush1.msra.mxu0 0.0
    %76 = vmatprep.subr.mxu0 0.0
    %77 = vmatpush1.msra.mxu0 0.0
    %78 = vmatprep.subr.mxu0 0.0
    %79 = vmatpush1.msra.mxu0 0.0
    %80 = vmatprep.subr.mxu0 0.0
    %81 = vmatpush1.msra.mxu0 0.0
    %82 = vmatprep.subr.mxu0 0.0
    %83 = vmatpush1.msra.mxu0 0.0
    %84 = vmatprep.subr.mxu0 0.0
    %85 = vmatpush1.msra.mxu0 0.0
    %86 = vmatprep.subr.mxu0 0.0
    %87 = vmatpush1.msra.mxu0 0.0
    %88 = vmatprep.subr.mxu0 0.0
    %89 = vmatpush1.msra.mxu0 0.0
    %90 = vmatprep.subr.mxu0 0.0
    %91 = vmatpush1.msra.mxu0 0.0
    %92 = vmatprep.mubr.f32.mxu0 0.0
    %93 = vmatmul.mubr.f32.gmra.mrb[0].mxu0 %v23
    %v94 = vpop.f32.mrb[0].mxu0
    %v95 = vadd.f32 0.0, %v94
    %v96 = vpop.f32.mrb[0].mxu0
    %97 = vmatprep.mubr.f32.mxu0 0.0
    %98 = vmatmul.mubr.f32.gmra.mrb[0].mxu0 %v26
    %v99 = vpop.f32.mrb[0].mxu0
    %v100 = vadd.f32 0.0, %v99
    %v101 = vpop.f32.mrb[0].mxu0
    %102 = vdwg.mxu0
    %v103 = vmax.f32 %v95, 0.0
    %v104 = vmax.f32 %v100, 0.0
    %v105 = vld [vmem:[%s2] sm:$0xf]
    %vm106 = vcmask 31744
    %v108 = vsel %vm106, %v103, 0
    %v111 = vsel %vm106, %v104, 0
    %vm113 = vcmask 1043456
    %v115 = vsel %vm113, %v105, 0
    %117 = vmatprep.subr.mxu0 0.0
    %118 = vmatpush1.msra.mxu0 %v115
    %119 = vmatprep.subr.mxu0 0.0
    %120 = vmatpush1.msra.mxu0 0.0
    %121 = vmatprep.subr.mxu0 0.0
    %122 = vmatpush1.msra.mxu0 0.0
    %123 = vmatprep.subr.mxu0 0.0
    %124 = vmatpush1.msra.mxu0 0.0
    %125 = vmatprep.subr.mxu0 0.0
    %126 = vmatpush1.msra.mxu0 0.0
    %127 = vmatprep.subr.mxu0 0.0
    %128 = vmatpush1.msra.mxu0 0.0
    %129 = vmatprep.subr.mxu0 0.0
    %130 = vmatpush1.msra.mxu0 0.0
    %131 = vmatprep.subr.mxu0 0.0
    %132 = vmatpush1.msra.mxu0 0.0
    %133 = vmatprep.subr.mxu0 0.0
    %134 = vmatpush1.msra.mxu0 0.0
    %135 = vmatprep.subr.mxu0 0.0
    %136 = vmatpush1.msra.mxu0 0.0
    %137 = vmatprep.subr.mxu0 0.0
    %138 = vmatpush1.msra.mxu0 0.0
    %139 = vmatprep.subr.mxu0 0.0
    %140 = vmatpush1.msra.mxu0 0.0
    %141 = vmatprep.subr.mxu0 0.0
    %142 = vmatpush1.msra.mxu0 0.0
    %143 = vmatprep.subr.mxu0 0.0
    %144 = vmatpush1.msra.mxu0 0.0
    %145 = vmatprep.subr.mxu0 0.0
    %146 = vmatpush1.msra.mxu0 0.0
    %147 = vmatprep.subr.mxu0 0.0
    %148 = vmatpush1.msra.mxu0 0.0
    %149 = vmatprep.subr.mxu0 0.0
    %150 = vmatpush1.msra.mxu0 0.0
    %151 = vmatprep.subr.mxu0 0.0
    %152 = vmatpush1.msra.mxu0 0.0
    %153 = vmatprep.subr.mxu0 0.0
    %154 = vmatpush1.msra.mxu0 0.0
    %155 = vmatprep.subr.mxu0 0.0
    %156 = vmatpush1.msra.mxu0 0.0
    %157 = vmatprep.subr.mxu0 0.0
    %158 = vmatpush1.msra.mxu0 0.0
    %159 = vmatprep.subr.mxu0 0.0
    %160 = vmatpush1.msra.mxu0 0.0
    %161 = vmatprep.subr.mxu0 0.0
    %162 = vmatpush1.msra.mxu0 0.0
    %163 = vmatprep.subr.mxu0 0.0
    %164 = vmatpush1.msra.mxu0 0.0
    %165 = vmatprep.subr.mxu0 0.0
    %166 = vmatpush1.msra.mxu0 0.0
    %167 = vmatprep.subr.mxu0 0.0
    %168 = vmatpush1.msra.mxu0 0.0
    %169 = vmatprep.subr.mxu0 0.0
    %170 = vmatpush1.msra.mxu0 0.0
    %171 = vmatprep.subr.mxu0 0.0
    %172 = vmatpush1.msra.mxu0 0.0
    %173 = vmatprep.subr.mxu0 0.0
    %174 = vmatpush1.msra.mxu0 0.0
    %175 = vmatprep.subr.mxu0 0.0
    %176 = vmatpush1.msra.mxu0 0.0
    %177 = vmatprep.subr.mxu0 0.0
    %178 = vmatpush1.msra.mxu0 0.0
    %179 = vmatprep.subr.mxu0 0.0
    %180 = vmatpush1.msra.mxu0 0.0
    %181 = vmatprep.mubr.f32.mxu0 0.0
    %182 = vmatmul.mubr.f32.gmra.mrb[0].mxu0 %v108
    %v183 = vpop.f32.mrb[0].mxu0
    %v184 = vadd.f32 0.0, %v183
    %v185 = vpop.f32.mrb[0].mxu0
    %186 = vmatprep.mubr.f32.mxu0 0.0
    %187 = vmatmul.mubr.f32.gmra.mrb[0].mxu0 %v111
    %v188 = vpop.f32.mrb[0].mxu0
    %v189 = vadd.f32 0.0, %v188
    %v190 = vpop.f32.mrb[0].mxu0
    %191 = vdwg.mxu0
    %v192 = vxor.u32 %v184, 2147483648
    %v193 = vxor.u32 %v189, 2147483648
    %v194 = vmul.f32 %v192, 1.442695
    %v195 = vpow.pop %v194
    %v196 = vmul.f32 %v193, 1.442695
    %v197 = vpow.pop %v196
    %v198 = vadd.f32 %v195, 1.0
    %v199 = vadd.f32 %v197, 1.0
    %v200 = vrcp.pop %v198
    %v201 = vmul.f32 1.0, %v200
    %v202 = vrcp.pop %v199
    %v203 = vmul.f32 1.0, %v202
    %v204 = vmul.f32 %v15, %v201
    %v205 = vmul.f32 %v16, %v203
    %206 = vst.msk [vmem:[#allocation2] sm:$0xff] %vm21, %v204
    %207 = vst.msk [vmem:[#allocation2 + $0x8] sm:$0xff] %vm21, %v205
    // Predicated region
    $region14: #{tpu_custom_call.1} parent=1 // pred_check
      _
    $region15: #{tpu_custom_call.1} parent=1 // pred_check_branch
      %209 = sbr.rel (0) target = $region17
    $region16: #{tpu_custom_call.1} parent=1 // pred_region
      %s211 = ssub.s32 256, 256
      %212 = vsyncadd [#allocation3], %s211
      %s213 = sshll.u32 [#allocation2], 4
      %s214 = int_to_ptr.vmem [resolvable:$true] %s213
      %219 = dma.vmem_to_hbm [thread:$0]  %s214, 256, %s3, [#allocation3], 128, 128, 8
    $region17: #{tpu_custom_call.1} parent=1 // pred_fallthru
      _
    // Predicated region
    $region18: #{tpu_custom_call.1} parent=1 // pred_check
      _
    $region19: #{tpu_custom_call.1} parent=1 // pred_check_branch
      %221 = sbr.rel (0) target = $region21
    $region20: #{tpu_custom_call.1} parent=1 // pred_region
      %222 = dma.done [#allocation3], 256
    $region21: #{tpu_custom_call.1} parent=1 // pred_fallthru
      _
    %223 = vsyncpa [#allocation3], 1

</llo_original>
